<compile_context>
chip_gen: v6e
topology: v6e:2x2x1
jax: 0.10.0
libtpu: 0.0.40
codegen_flags: <defaults>
</compile_context>

<pallas_src>
import jax
import jax.numpy as jnp
from jax.experimental import pallas as pl
from jax.experimental.pallas import tpu as pltpu


# ----------------------------- model config -----------------------------
D_ACTION = 4
D_STATE = 4
N_UNITS = 32
N_LAYERS = 2          # >= 2; total of N_LAYERS + 1 EnsembleDenseLayers
ENSEMBLE = 4
BATCH = 8
MIN_LOG_VAR = -5.0
MAX_LOG_VAR = -1.0


# ------------------------------- kernel ---------------------------------
def _make_kernel(n_total_layers, d_state, slot):
    """Pallas kernel for a fixed (static) number of dense layers.

    Refs: x (TB, E*slot) f32, then [w0, b0, w1, b1, ...] slot-aligned
    block-diagonal params (weights bf16, biases f32), then out (TB, E*slot).
    Per-member slot layout:  input  = [state | action | 0-pad]
                             output = [mean  | var    | junk ]  (same offsets)
    """
    pow2 = (slot & (slot - 1)) == 0

    def kernel(x_ref, *refs):
        param_refs = refs[: 2 * n_total_layers]
        out_ref = refs[2 * n_total_layers]

        x = x_ref[...]                                    # (TB, E*slot) f32
        h = x
        for lyr in range(n_total_layers):                 # static unroll
            w = param_refs[2 * lyr][...]                  # (E*slot, E*slot) bf16
            b = param_refs[2 * lyr + 1][...]              # (1, E*slot)      f32
            h = jnp.dot(h.astype(w.dtype), w,
                        preferred_element_type=jnp.float32) + b
            if lyr < n_total_layers - 1:
                h = h * jax.nn.sigmoid(h)                 # swish in f32 (v5e-safe)
            # last layer is linear (identity)

        # Mean columns are slot offsets [0, d_state) — same lanes as the state
        # columns of x, so the residual add reuses x directly (no resid input).
        col = jax.lax.broadcasted_iota(jnp.int32, h.shape, 1)
        off = (col & (slot - 1)) if pow2 else (col % slot)
        is_mean = off < d_state
        log_var = MIN_LOG_VAR + (MAX_LOG_VAR - MIN_LOG_VAR) * jax.nn.sigmoid(h)
        var = jnp.exp(log_var)
        out_ref[...] = jnp.where(is_mean, h + x, var)

    return kernel


# --------------------------- parameter packing ---------------------------
def init_params(key):
    """Parameter init mimicking the PyTorch module's scheme.

    Hidden/swish layers: xavier_uniform; final linear layer: xavier_normal;
    biases: zeros.  Returns per-ensemble weights/biases (unpacked).
    """
    dims = [D_STATE + D_ACTION] + [N_UNITS] * (N_LAYERS - 1) + [N_UNITS, 2 * D_STATE]
    weights, biases = [], []
    keys = jax.random.split(key, N_LAYERS + 1)
    for lyr in range(N_LAYERS + 1):
        n_in, n_out = dims[lyr], dims[lyr + 1]
        if lyr < N_LAYERS:  # swish layers -> xavier uniform
            bound = (6.0 / (n_in + n_out)) ** 0.5
            w = jax.random.uniform(
                keys[lyr], (ENSEMBLE, n_in, n_out), jnp.float32, -bound, bound)
        else:               # final linear layer -> xavier normal
            std = (2.0 / (n_in + n_out)) ** 0.5
            w = std * jax.random.normal(keys[lyr], (ENSEMBLE, n_in, n_out), jnp.float32)
        b = jnp.zeros((ENSEMBLE, 1, n_out), jnp.float32)
        weights.append(w)
        biases.append(b)
    return weights, biases


def pack_params(weights, biases, *, mxu_dtype=jnp.bfloat16):
    """Pack per-ensemble params into slot-aligned block-diagonal matrices.

    Every layer uses a uniform per-member slot of `slot = max(layer widths)`
    lanes; member m's features occupy lanes [m*slot, m*slot + width).  All
    packed weights are (E*slot, E*slot) bf16 (MXU input dtype), all biases
    (1, E*slot) f32.  Done once, outside the jitted forward.
    """
    e = weights[0].shape[0]
    widths = [w.shape[1] for w in weights] + [weights[-1].shape[2]]
    slot = max(widths)                    # 32 for this config
    lanes = e * slot                      # 128
    packed = []
    for w, b in zip(weights, biases):
        _, n_in, n_out = w.shape
        wbd = jnp.zeros((lanes, lanes), jnp.float32)
        brow = jnp.zeros((1, lanes), jnp.float32)
        for m in range(e):
            wbd = wbd.at[m * slot:m * slot + n_in,
                         m * slot:m * slot + n_out].set(w[m])
            brow = brow.at[:, m * slot:m * slot + n_out].set(b[m])
        packed.append(wbd.astype(mxu_dtype))   # MXU inputs in bf16
        packed.append(brow)                    # biases stay f32
    return packed


# ------------------------------- forward --------------------------------
@jax.jit
def model_forward(states, actions, *packed_params):
    """states/actions: (E, B, d_state)/(E, B, d_action) -> (mean, var), each (E, B, d_state)."""
    e, bsz, d_state = states.shape
    d_action = actions.shape[-1]
    d_in = d_state + d_action
    lanes = packed_params[0].shape[0]
    slot = lanes // e
    assert slot * e == lanes and d_in <= slot and 2 * d_state <= slot
    n_total = len(packed_params) // 2

    # Slot-aligned input slab: per member [state | action | 0-pad] on `slot` lanes.
    parts = [states, actions]
    if slot > d_in:
        parts.append(jnp.zeros((e, bsz, slot - d_in), states.dtype))
    x = jnp.concatenate(parts, axis=-1).transpose(1, 0, 2).reshape(bsz, lanes)

    # Batch tiling: grid of 1 at B=8; scales to large MPC-particle batches with
    # weights VMEM-resident (constant index_map) across all grid steps.
    bp = -(-bsz // 8) * 8
    tb = bp if bp <= 256 else 256
    bp = -(-bp // tb) * tb
    if bp != bsz:
        x = jnp.pad(x, ((0, bp - bsz), (0, 0)))

    kernel = _make_kernel(n_total, d_state, slot)
    in_specs = [pl.BlockSpec((tb, lanes), lambda i: (i, 0))]
    in_specs += [pl.BlockSpec(p.shape, lambda i: (0, 0)) for p in packed_params]

    out = pl.pallas_call(
        kernel,
        grid=(bp // tb,),
        in_specs=in_specs,
        out_specs=pl.BlockSpec((tb, lanes), lambda i: (i, 0)),
        out_shape=jax.ShapeDtypeStruct((bp, lanes), jnp.float32),
        compiler_params=pltpu.CompilerParams(
            dimension_semantics=("parallel",)),   # shards batch tiles on v7x's 2 TCs
    )(x, *packed_params)

    # Split the lane-dense slab back into (E, B, d_state) mean / var.
    out = out[:bsz].reshape(bsz, e, slot)[..., :2 * d_state].transpose(1, 0, 2)
    return out[..., :d_state], out[..., d_state:]


# ------------------------------ reference -------------------------------
def reference_forward(states, actions, weights, biases, mxu_dtype=jnp.bfloat16):
    """Pure-JAX reference of the PyTorch Model.forward (normalizer is None),
    using the same mixed precision as the kernel (bf16 MXU inputs, f32 accum)."""
    x = jnp.concatenate([states, actions], axis=2)
    n_total = len(weights)
    for lyr in range(n_total):
        x = jnp.einsum("ebi,eio->ebo",
                       x.astype(mxu_dtype), weights[lyr].astype(mxu_dtype),
                       preferred_element_type=jnp.float32) + biases[lyr]
        if lyr < n_total - 1:
            x = x * jax.nn.sigmoid(x)
    delta_mean, log_var_raw = x[..., :D_STATE], x[..., D_STATE:]
    log_var = MIN_LOG_VAR + (MAX_LOG_VAR - MIN_LOG_VAR) * jax.nn.sigmoid(log_var_raw)
    return delta_mean + states, jnp.exp(log_var)


if __name__ == "__main__":
    key = jax.random.PRNGKey(0)
    k_s, k_a, k_p = jax.random.split(key, 3)

    states = jax.random.normal(k_s, (ENSEMBLE, BATCH, D_STATE), jnp.float32)
    actions = jax.random.normal(k_a, (ENSEMBLE, BATCH, D_ACTION), jnp.float32)
    weights, biases = init_params(k_p)

    packed_params = pack_params(weights, biases)   # one-time bf16 block-diag packing

    mean, var = model_forward(states, actions, *packed_params)
    jax.block_until_ready((mean, var))

    # correctness check against a precision-matched pure-JAX reference
    ref_mean, ref_var = reference_forward(states, actions, weights, biases)
    assert mean.shape == (ENSEMBLE, BATCH, D_STATE)
    assert var.shape == (ENSEMBLE, BATCH, D_STATE)
    assert bool(jnp.all(var > 0.0))
    assert jnp.allclose(mean, ref_mean, atol=1e-2, rtol=1e-2), \
        float(jnp.max(jnp.abs(mean - ref_mean)))
    assert jnp.allclose(var, ref_var, atol=1e-2, rtol=1e-2), \
        float(jnp.max(jnp.abs(var - ref_var)))

    print("KERNEL_OK")
</pallas_src>

<mosaic_0001>
module attributes {stable_mosaic.version = 11 : i64} {
  func.func @kernel(%arg0: i32, %arg1: memref<8x128xf32, #tpu.memory_space<vmem>>, %arg2: memref<128x128xbf16, #tpu.memory_space<vmem>>, %arg3: memref<1x128xf32, #tpu.memory_space<vmem>>, %arg4: memref<128x128xbf16, #tpu.memory_space<vmem>>, %arg5: memref<1x128xf32, #tpu.memory_space<vmem>>, %arg6: memref<128x128xbf16, #tpu.memory_space<vmem>>, %arg7: memref<1x128xf32, #tpu.memory_space<vmem>>, %arg8: memref<8x128xf32, #tpu.memory_space<vmem>>) attributes {dimension_semantics = [#tpu.dimension_semantics<parallel>], iteration_bounds = array<i64: 1>, scalar_prefetch = 0 : i64, scratch_operands = 0 : i64, tpu.core_type = #tpu.core_type<tc>, window_params = [{transform_indices = @transform_0, window_bounds = array<i64: 8, 128>}, {pipeline_mode = #tpu.pipeline_mode<synchronous>, transform_indices = @transform_1, window_bounds = array<i64: 128, 128>}, {pipeline_mode = #tpu.pipeline_mode<synchronous>, transform_indices = @transform_2, window_bounds = array<i64: 1, 128>}, {pipeline_mode = #tpu.pipeline_mode<synchronous>, transform_indices = @transform_3, window_bounds = array<i64: 128, 128>}, {pipeline_mode = #tpu.pipeline_mode<synchronous>, transform_indices = @transform_4, window_bounds = array<i64: 1, 128>}, {pipeline_mode = #tpu.pipeline_mode<synchronous>, transform_indices = @transform_5, window_bounds = array<i64: 128, 128>}, {pipeline_mode = #tpu.pipeline_mode<synchronous>, transform_indices = @transform_6, window_bounds = array<i64: 1, 128>}, {transform_indices = @transform_7, window_bounds = array<i64: 8, 128>}]} {
    %c0 = arith.constant 0 : index
    %c0_0 = arith.constant 0 : index
    %0 = vector.load %arg1[%c0, %c0_0] : memref<8x128xf32, #tpu.memory_space<vmem>>, vector<8x128xf32>
    %c0_1 = arith.constant 0 : index
    %c0_2 = arith.constant 0 : index
    %1 = vector.load %arg2[%c0_1, %c0_2] : memref<128x128xbf16, #tpu.memory_space<vmem>>, vector<128x128xbf16>
    %c0_3 = arith.constant 0 : index
    %c0_4 = arith.constant 0 : index
    %2 = vector.load %arg3[%c0_3, %c0_4] : memref<1x128xf32, #tpu.memory_space<vmem>>, vector<1x128xf32>
    %3 = arith.truncf %0 : vector<8x128xf32> to vector<8x128xbf16>
    %cst = arith.constant dense<0.000000e+00> : vector<8x128xf32>
    %4 = tpu.matmul %3, %1, %cst {dimension_numbers = #tpu.dot_dimension_numbers<[1], [0], [0], [1], [0, 0, 1, 1], [], []>} : vector<8x128xbf16>, vector<128x128xbf16>, vector<8x128xf32> -> vector<8x128xf32>
    %5 = vector.broadcast %2 : vector<1x128xf32> to vector<8x128xf32>
    %6 = arith.addf %4, %5 : vector<8x128xf32>
    %7 = arith.negf %6 : vector<8x128xf32>
    %8 = math.exp %7 : vector<8x128xf32>
    %cst_5 = arith.constant 1.000000e+00 : f32
    %9 = vector.broadcast %cst_5 : f32 to vector<8x128xf32>
    %10 = arith.addf %9, %8 : vector<8x128xf32>
    %11 = arith.divf %9, %10 : vector<8x128xf32>
    %12 = arith.mulf %6, %11 : vector<8x128xf32>
    %c0_6 = arith.constant 0 : index
    %c0_7 = arith.constant 0 : index
    %13 = vector.load %arg4[%c0_6, %c0_7] : memref<128x128xbf16, #tpu.memory_space<vmem>>, vector<128x128xbf16>
    %c0_8 = arith.constant 0 : index
    %c0_9 = arith.constant 0 : index
    %14 = vector.load %arg5[%c0_8, %c0_9] : memref<1x128xf32, #tpu.memory_space<vmem>>, vector<1x128xf32>
    %15 = arith.truncf %12 : vector<8x128xf32> to vector<8x128xbf16>
    %cst_10 = arith.constant dense<0.000000e+00> : vector<8x128xf32>
    %16 = tpu.matmul %15, %13, %cst_10 {dimension_numbers = #tpu.dot_dimension_numbers<[1], [0], [0], [1], [0, 0, 1, 1], [], []>} : vector<8x128xbf16>, vector<128x128xbf16>, vector<8x128xf32> -> vector<8x128xf32>
    %17 = vector.broadcast %14 : vector<1x128xf32> to vector<8x128xf32>
    %18 = arith.addf %16, %17 : vector<8x128xf32>
    %19 = arith.negf %18 : vector<8x128xf32>
    %20 = math.exp %19 : vector<8x128xf32>
    %cst_11 = arith.constant 1.000000e+00 : f32
    %21 = vector.broadcast %cst_11 : f32 to vector<8x128xf32>
    %22 = arith.addf %21, %20 : vector<8x128xf32>
    %23 = arith.divf %21, %22 : vector<8x128xf32>
    %24 = arith.mulf %18, %23 : vector<8x128xf32>
    %c0_12 = arith.constant 0 : index
    %c0_13 = arith.constant 0 : index
    %25 = vector.load %arg6[%c0_12, %c0_13] : memref<128x128xbf16, #tpu.memory_space<vmem>>, vector<128x128xbf16>
    %c0_14 = arith.constant 0 : index
    %c0_15 = arith.constant 0 : index
    %26 = vector.load %arg7[%c0_14, %c0_15] : memref<1x128xf32, #tpu.memory_space<vmem>>, vector<1x128xf32>
    %27 = arith.truncf %24 : vector<8x128xf32> to vector<8x128xbf16>
    %cst_16 = arith.constant dense<0.000000e+00> : vector<8x128xf32>
    %28 = tpu.matmul %27, %25, %cst_16 {dimension_numbers = #tpu.dot_dimension_numbers<[1], [0], [0], [1], [0, 0, 1, 1], [], []>} : vector<8x128xbf16>, vector<128x128xbf16>, vector<8x128xf32> -> vector<8x128xf32>
    %29 = vector.broadcast %26 : vector<1x128xf32> to vector<8x128xf32>
    %30 = arith.addf %28, %29 : vector<8x128xf32>
    %31 = tpu.iota {dimensions = array<i32: 1>} : vector<8x128xi32>
    %c31_i32 = arith.constant 31 : i32
    %32 = vector.broadcast %c31_i32 : i32 to vector<8x128xi32>
    %33 = arith.andi %31, %32 : vector<8x128xi32>
    %c4_i32 = arith.constant 4 : i32
    %34 = vector.broadcast %c4_i32 : i32 to vector<8x128xi32>
    %35 = arith.cmpi slt, %33, %34 : vector<8x128xi32>
    %36 = arith.negf %30 : vector<8x128xf32>
    %37 = math.exp %36 : vector<8x128xf32>
    %cst_17 = arith.constant 1.000000e+00 : f32
    %38 = vector.broadcast %cst_17 : f32 to vector<8x128xf32>
    %39 = arith.addf %38, %37 : vector<8x128xf32>
    %40 = arith.divf %38, %39 : vector<8x128xf32>
    %cst_18 = arith.constant 4.000000e+00 : f32
    %41 = vector.broadcast %cst_18 : f32 to vector<8x128xf32>
    %42 = arith.mulf %41, %40 : vector<8x128xf32>
    %cst_19 = arith.constant -5.000000e+00 : f32
    %43 = vector.broadcast %cst_19 : f32 to vector<8x128xf32>
    %44 = arith.addf %43, %42 : vector<8x128xf32>
    %45 = math.exp %44 : vector<8x128xf32>
    %46 = arith.addf %30, %0 : vector<8x128xf32>
    %47 = arith.select %35, %46, %45 : vector<8x128xi1>, vector<8x128xf32>
    %c0_20 = arith.constant 0 : index
    %c0_21 = arith.constant 0 : index
    %48 = vector.load %arg8[%c0_20, %c0_21] : memref<8x128xf32, #tpu.memory_space<vmem>>, vector<8x128xf32>
    tpu.vector_store %arg8[%c0_20, %c0_21], %47 {strides = array<i32>} : memref<8x128xf32, #tpu.memory_space<vmem>>, vector<8x128xf32>,
    return
  }
  func.func @transform_0(%arg0: i32) -> (i32, i32) {
    %c0_i32 = arith.constant 0 : i32
    %c0_i32_0 = arith.constant 0 : i32
    return %arg0, %c0_i32 : i32, i32
  }
  func.func @transform_1(%arg0: i32) -> (i32, i32) {
    %c0_i32 = arith.constant 0 : i32
    %c0_i32_0 = arith.constant 0 : i32
    %c0_i32_1 = arith.constant 0 : i32
    return %c0_i32, %c0_i32_0 : i32, i32
  }
  func.func @transform_2(%arg0: i32) -> (i32, i32) {
    %c0_i32 = arith.constant 0 : i32
    %c0_i32_0 = arith.constant 0 : i32
    %c0_i32_1 = arith.constant 0 : i32
    return %c0_i32, %c0_i32_0 : i32, i32
  }
  func.func @transform_3(%arg0: i32) -> (i32, i32) {
    %c0_i32 = arith.constant 0 : i32
    %c0_i32_0 = arith.constant 0 : i32
    %c0_i32_1 = arith.constant 0 : i32
    return %c0_i32, %c0_i32_0 : i32, i32
  }
  func.func @transform_4(%arg0: i32) -> (i32, i32) {
    %c0_i32 = arith.constant 0 : i32
    %c0_i32_0 = arith.constant 0 : i32
    %c0_i32_1 = arith.constant 0 : i32
    return %c0_i32, %c0_i32_0 : i32, i32
  }
  func.func @transform_5(%arg0: i32) -> (i32, i32) {
    %c0_i32 = arith.constant 0 : i32
    %c0_i32_0 = arith.constant 0 : i32
    %c0_i32_1 = arith.constant 0 : i32
    return %c0_i32, %c0_i32_0 : i32, i32
  }
  func.func @transform_6(%arg0: i32) -> (i32, i32) {
    %c0_i32 = arith.constant 0 : i32
    %c0_i32_0 = arith.constant 0 : i32
    %c0_i32_1 = arith.constant 0 : i32
    return %c0_i32, %c0_i32_0 : i32, i32
  }
  func.func @transform_7(%arg0: i32) -> (i32, i32) {
    %c0_i32 = arith.constant 0 : i32
    %c0_i32_0 = arith.constant 0 : i32
    return %arg0, %c0_i32 : i32, i32
  }
}

</mosaic_0001>

<llo_original>
// kernel: model_forward.1
$region0: #{model_forward.1}
  #allocation0 [shape = 'u32[]', space=smem, size = 0x4, offset = 0x4, fixed_abs, tag = 'smem constant byte address 0x4 - core index']
  #allocation1 [shape = 'u32[144,128]{1,0:T(1,128)}', space=vmem, size = 0x12000, scoped, tag = 'internal scratch']
  %s0 = inlined_call_operand.vmem [shape: f32[8,128], index: 0, kind: input, shape index: {}]
  %s1 = inlined_call_operand.vmem [shape: bf16[128,128], index: 1, kind: input, shape index: {}]
  %s2 = inlined_call_operand.vmem [shape: f32[1,128], index: 2, kind: input, shape index: {}]
  %s3 = inlined_call_operand.vmem [shape: bf16[128,128], index: 3, kind: input, shape index: {}]
  %s4 = inlined_call_operand.vmem [shape: f32[1,128], index: 4, kind: input, shape index: {}]
  %s5 = inlined_call_operand.vmem [shape: bf16[128,128], index: 5, kind: input, shape index: {}]
  %s6 = inlined_call_operand.vmem [shape: f32[1,128], index: 6, kind: input, shape index: {}]
  %s7 = inlined_call_operand.vmem [shape: f32[8,128], index: 7, kind: output, shape index: {}]
  %s8 = sld [smem:[#allocation0]]
  $region38: #{model_forward.1} parent=0
    _
  %s10 = ssub.s32 1, %s8
  %s11 = scalar_select 0, %s10, %s8
  // Predicated region
  $region2: #{model_forward.1} parent=0 // pred_check
    _
  $region3: #{model_forward.1} parent=0 // pred_check_branch
    %13 = sbr.rel (0) target = $region5
  $region4: #{model_forward.1} parent=0 // pred_region
    _
  $region5: #{model_forward.1} parent=0 // pred_fallthru
    _
  // Predicated region
  $region6: #{model_forward.1} parent=0 // pred_check
    _
  $region7: #{model_forward.1} parent=0 // pred_check_branch
    %15 = sbr.rel (0) target = $region9
  $region8: #{model_forward.1} parent=0 // pred_region
    _
  $region9: #{model_forward.1} parent=0 // pred_fallthru
    _
  // Predicated region
  $region10: #{model_forward.1} parent=0 // pred_check
    _
  $region11: #{model_forward.1} parent=0 // pred_check_branch
    %17 = sbr.rel (0) target = $region13
  $region12: #{model_forward.1} parent=0 // pred_region
    _
  $region13: #{model_forward.1} parent=0 // pred_fallthru
    _
  // Predicated region
  $region14: #{model_forward.1} parent=0 // pred_check
    _
  $region15: #{model_forward.1} parent=0 // pred_check_branch
    %19 = sbr.rel (0) target = $region17
  $region16: #{model_forward.1} parent=0 // pred_region
    _
  $region17: #{model_forward.1} parent=0 // pred_fallthru
    _
  // Predicated region
  $region18: #{model_forward.1} parent=0 // pred_check
    _
  $region19: #{model_forward.1} parent=0 // pred_check_branch
    %21 = sbr.rel (0) target = $region21
  $region20: #{model_forward.1} parent=0 // pred_region
    _
  $region21: #{model_forward.1} parent=0 // pred_fallthru
    _
  // Predicated region
  $region22: #{model_forward.1} parent=0 // pred_check
    _
  $region23: #{model_forward.1} parent=0 // pred_check_branch
    %23 = sbr.rel (0) target = $region25
  $region24: #{model_forward.1} parent=0 // pred_region
    _
  $region25: #{model_forward.1} parent=0 // pred_fallthru
    _
  // Predicated region
  $region26: #{model_forward.1} parent=0 // pred_check
    _
  $region27: #{model_forward.1} parent=0 // pred_check_branch
    %25 = sbr.rel (0) target = $region29
  $region28: #{model_forward.1} parent=0 // pred_region
    _
  $region29: #{model_forward.1} parent=0 // pred_fallthru
    _
  %v27 = vld [vmem:[%s0] sm:$0xff]
  %v28 = vld [vmem:[%s1] sm:$0xf]
  %v29 = vld [vmem:[%s1 + $0x4] sm:$0xf]
  %v30 = vld [vmem:[%s1 + $0x8] sm:$0xf]
  %v31 = vld [vmem:[%s1 + $0xc] sm:$0xf]
  %v32 = vld [vmem:[%s1 + $0x10] sm:$0xf]
  %v33 = vld [vmem:[%s1 + $0x14] sm:$0xf]
  %v34 = vld [vmem:[%s1 + $0x18] sm:$0xf]
  %v35 = vld [vmem:[%s1 + $0x1c] sm:$0xf]
  %v36 = vld [vmem:[%s1 + $0x20] sm:$0xf]
  %v37 = vld [vmem:[%s1 + $0x24] sm:$0xf]
  %v38 = vld [vmem:[%s1 + $0x28] sm:$0xf]
  %v39 = vld [vmem:[%s1 + $0x2c] sm:$0xf]
  %v40 = vld [vmem:[%s1 + $0x30] sm:$0xf]
  %v41 = vld [vmem:[%s1 + $0x34] sm:$0xf]
  %v42 = vld [vmem:[%s1 + $0x38] sm:$0xf]
  %v43 = vld [vmem:[%s1 + $0x3c] sm:$0xf]
  %v44 = vld [vmem:[%s2] sm:$0x1]
  %v45 = vpack.c.bf16 %v27, %v27
  %v47 = vlaneseq
  %v48 = vshrl.u32 %v47, 7
  %v49 = vsub.s32 0, %v48
  %v50 = vrot.slane %v44, %v49
  %v68 = vunpack.c.l.b16 %v28
  %v69 = vunpack.c.l.b16 %v29
  %v70 = vunpack.c.l.b16 %v30
  %v71 = vunpack.c.l.b16 %v31
  %v72 = vunpack.c.l.b16 %v32
  %v73 = vunpack.c.l.b16 %v33
  %v74 = vunpack.c.l.b16 %v34
  %v75 = vunpack.c.l.b16 %v35
  %v76 = vunpack.c.l.b16 %v36
  %v77 = vunpack.c.l.b16 %v37
  %v78 = vunpack.c.l.b16 %v38
  %v79 = vunpack.c.l.b16 %v39
  %v80 = vunpack.c.l.b16 %v40
  %v81 = vunpack.c.l.b16 %v41
  %v82 = vunpack.c.l.b16 %v42
  %v83 = vunpack.c.l.b16 %v43
  %v84 = vpack.c.b16 %v69, %v68
  %v85 = vpack.c.b16 %v71, %v70
  %v86 = vpack.c.b16 %v73, %v72
  %v87 = vpack.c.b16 %v75, %v74
  %v88 = vpack.c.b16 %v77, %v76
  %v89 = vpack.c.b16 %v79, %v78
  %v90 = vpack.c.b16 %v81, %v80
  %v91 = vpack.c.b16 %v83, %v82
  %100 = vmatprep.subr.bf16.mxu0 0
  %101 = vmatpush1.bf16.msra.mxu0 %v91
  %102 = vmatprep.subr.bf16.mxu0 0
  %103 = vmatpush1.bf16.msra.mxu0 %v90
  %104 = vmatprep.subr.bf16.mxu0 0
  %105 = vmatpush1.bf16.msra.mxu0 %v89
  %106 = vmatprep.subr.bf16.mxu0 0
  %107 = vmatpush1.bf16.msra.mxu0 %v88
  %108 = vmatprep.subr.bf16.mxu0 0
  %109 = vmatpush1.bf16.msra.mxu0 %v87
  %110 = vmatprep.subr.bf16.mxu0 0
  %111 = vmatpush1.bf16.msra.mxu0 %v86
  %112 = vmatprep.subr.bf16.mxu0 0
  %113 = vmatpush1.bf16.msra.mxu0 %v85
  %114 = vmatprep.subr.bf16.mxu0 0
  %115 = vmatpush1.bf16.msra.mxu0 %v84
  %116 = vmatprep.subr.bf16.mxu0 0
  %117 = vmatpush2.bf16.msra.mxu0 0
  %118 = vmatprep.subr.bf16.mxu0 0
  %119 = vmatpush2.bf16.msra.mxu0 0
  %120 = vmatprep.subr.bf16.mxu0 0
  %121 = vmatpush2.bf16.msra.mxu0 0
  %122 = vmatprep.subr.bf16.mxu0 0
  %123 = vmatpush2.bf16.msra.mxu0 0
  %124 = vmatprep.subr.bf16.mxu0 0
  %125 = vmatpush2.bf16.msra.mxu0 0
  %126 = vmatprep.subr.bf16.mxu0 0
  %127 = vmatpush2.bf16.msra.mxu0 0
  %128 = vmatprep.subr.bf16.mxu0 0
  %129 = vmatpush2.bf16.msra.mxu0 0
  %130 = vmatprep.subr.bf16.mxu0 0
  %131 = vmatpush2.bf16.msra.mxu0 0
  %132 = vmatprep.mubr.bf16.mxu0 0
  %133 = vmatmul.mubr.bf16.gmra.mxu0 %v45
  %v134 = vpop.f32.mrf.mxu0
  %v135 = vadd.f32 %v50, %v134
  %v136 = vpop.f32.mrf.mxu0
  %v137 = vpop.f32.mrf.mxu0
  %v138 = vpop.f32.mrf.mxu0
  %139 = vdwg.mxu0
  %v140 = vxor.u32 %v135, 2147483648
  %v141 = vmul.f32 %v140, 1.442695
  %v142 = vpow.pop %v141
  %v143 = vadd.f32 %v142, 1.0
  %v144 = vrcp.pop %v143
  %v145 = vmul.f32 1.0, %v144
  %v146 = vmul.f32 %v135, %v145
  %v147 = vld [vmem:[%s3] sm:$0xf]
  %v148 = vld [vmem:[%s3 + $0x4] sm:$0xf]
  %v149 = vld [vmem:[%s3 + $0x8] sm:$0xf]
  %v150 = vld [vmem:[%s3 + $0xc] sm:$0xf]
  %v151 = vld [vmem:[%s3 + $0x10] sm:$0xf]
  %v152 = vld [vmem:[%s3 + $0x14] sm:$0xf]
  %v153 = vld [vmem:[%s3 + $0x18] sm:$0xf]
  %v154 = vld [vmem:[%s3 + $0x1c] sm:$0xf]
  %v155 = vld [vmem:[%s3 + $0x20] sm:$0xf]
  %v156 = vld [vmem:[%s3 + $0x24] sm:$0xf]
  %v157 = vld [vmem:[%s3 + $0x28] sm:$0xf]
  %v158 = vld [vmem:[%s3 + $0x2c] sm:$0xf]
  %v159 = vld [vmem:[%s3 + $0x30] sm:$0xf]
  %v160 = vld [vmem:[%s3 + $0x34] sm:$0xf]
  %v161 = vld [vmem:[%s3 + $0x38] sm:$0xf]
  %v162 = vld [vmem:[%s3 + $0x3c] sm:$0xf]
  %v163 = vld [vmem:[%s4] sm:$0x1]
  %v164 = vpack.c.bf16 %v146, %v146
  %v166 = vlaneseq
  %v167 = vshrl.u32 %v166, 7
  %v168 = vsub.s32 0, %v167
  %v169 = vrot.slane %v163, %v168
  %v187 = vunpack.c.l.b16 %v147
  %v188 = vunpack.c.l.b16 %v148
  %v189 = vunpack.c.l.b16 %v149
  %v190 = vunpack.c.l.b16 %v150
  %v191 = vunpack.c.l.b16 %v151
  %v192 = vunpack.c.l.b16 %v152
  %v193 = vunpack.c.l.b16 %v153
  %v194 = vunpack.c.l.b16 %v154
  %v195 = vunpack.c.l.b16 %v155
  %v196 = vunpack.c.l.b16 %v156
  %v197 = vunpack.c.l.b16 %v157
  %v198 = vunpack.c.l.b16 %v158
  %v199 = vunpack.c.l.b16 %v159
  %v200 = vunpack.c.l.b16 %v160
  %v201 = vunpack.c.l.b16 %v161
  %v202 = vunpack.c.l.b16 %v162
  %v203 = vpack.c.b16 %v188, %v187
  %v204 = vpack.c.b16 %v190, %v189
  %v205 = vpack.c.b16 %v192, %v191
  %v206 = vpack.c.b16 %v194, %v193
  %v207 = vpack.c.b16 %v196, %v195
  %v208 = vpack.c.b16 %v198, %v197
  %v209 = vpack.c.b16 %v200, %v199
  %v210 = vpack.c.b16 %v202, %v201
  %219 = vmatprep.subr.bf16.mxu0 0
  %220 = vmatpush1.bf16.msra.mxu0 %v210
  %221 = vmatprep.subr.bf16.mxu0 0
  %222 = vmatpush1.bf16.msra.mxu0 %v209
  %223 = vmatprep.subr.bf16.mxu0 0
  %224 = vmatpush1.bf16.msra.mxu0 %v208
  %225 = vmatprep.subr.bf16.mxu0 0
  %226 = vmatpush1.bf16.msra.mxu0 %v207
  %227 = vmatprep.subr.bf16.mxu0 0
  %228 = vmatpush1.bf16.msra.mxu0 %v206
  %229 = vmatprep.subr.bf16.mxu0 0
  %230 = vmatpush1.bf16.msra.mxu0 %v205
  %231 = vmatprep.subr.bf16.mxu0 0
  %232 = vmatpush1.bf16.msra.mxu0 %v204
  %233 = vmatprep.subr.bf16.mxu0 0
  %234 = vmatpush1.bf16.msra.mxu0 %v203
  %235 = vmatprep.subr.bf16.mxu0 0
  %236 = vmatpush2.bf16.msra.mxu0 0
  %237 = vmatprep.subr.bf16.mxu0 0
  %238 = vmatpush2.bf16.msra.mxu0 0
  %239 = vmatprep.subr.bf16.mxu0 0
  %240 = vmatpush2.bf16.msra.mxu0 0
  %241 = vmatprep.subr.bf16.mxu0 0
  %242 = vmatpush2.bf16.msra.mxu0 0
  %243 = vmatprep.subr.bf16.mxu0 0
  %244 = vmatpush2.bf16.msra.mxu0 0
  %245 = vmatprep.subr.bf16.mxu0 0
  %246 = vmatpush2.bf16.msra.mxu0 0
  %247 = vmatprep.subr.bf16.mxu0 0
  %248 = vmatpush2.bf16.msra.mxu0 0
  %249 = vmatprep.subr.bf16.mxu0 0
  %250 = vmatpush2.bf16.msra.mxu0 0
  %251 = vmatprep.mubr.bf16.mxu0 0
  %252 = vmatmul.mubr.bf16.gmra.mxu0 %v164
  %v253 = vpop.f32.mrf.mxu0
  %v254 = vadd.f32 %v169, %v253
  %v255 = vpop.f32.mrf.mxu0
  %v256 = vpop.f32.mrf.mxu0
  %v257 = vpop.f32.mrf.mxu0
  %258 = vdwg.mxu0
  %v259 = vxor.u32 %v254, 2147483648
  %v260 = vmul.f32 %v259, 1.442695
  %v261 = vpow.pop %v260
  %v262 = vadd.f32 %v261, 1.0
  %v263 = vrcp.pop %v262
  %v264 = vmul.f32 1.0, %v263
  %v265 = vmul.f32 %v254, %v264
  %v266 = vld [vmem:[%s5] sm:$0xf]
  %v267 = vld [vmem:[%s5 + $0x4] sm:$0xf]
  %v268 = vld [vmem:[%s5 + $0x8] sm:$0xf]
  %v269 = vld [vmem:[%s5 + $0xc] sm:$0xf]
  %v270 = vld [vmem:[%s5 + $0x10] sm:$0xf]
  %v271 = vld [vmem:[%s5 + $0x14] sm:$0xf]
  %v272 = vld [vmem:[%s5 + $0x18] sm:$0xf]
  %v273 = vld [vmem:[%s5 + $0x1c] sm:$0xf]
  %v274 = vld [vmem:[%s5 + $0x20] sm:$0xf]
  %v275 = vld [vmem:[%s5 + $0x24] sm:$0xf]
  %v276 = vld [vmem:[%s5 + $0x28] sm:$0xf]
  %v277 = vld [vmem:[%s5 + $0x2c] sm:$0xf]
  %v278 = vld [vmem:[%s5 + $0x30] sm:$0xf]
  %v279 = vld [vmem:[%s5 + $0x34] sm:$0xf]
  %v280 = vld [vmem:[%s5 + $0x38] sm:$0xf]
  %v281 = vld [vmem:[%s5 + $0x3c] sm:$0xf]
  %v282 = vld [vmem:[%s6] sm:$0x1]
  %v283 = vpack.c.bf16 %v265, %v265
  %v285 = vlaneseq
  %v286 = vshrl.u32 %v285, 7
  %v287 = vsub.s32 0, %v286
  %v288 = vrot.slane %v282, %v287
  %v306 = vunpack.c.l.b16 %v266
  %v307 = vunpack.c.l.b16 %v267
  %v308 = vunpack.c.l.b16 %v268
  %v309 = vunpack.c.l.b16 %v269
  %v310 = vunpack.c.l.b16 %v270
  %v311 = vunpack.c.l.b16 %v271
  %v312 = vunpack.c.l.b16 %v272
  %v313 = vunpack.c.l.b16 %v273
  %v314 = vunpack.c.l.b16 %v274
  %v315 = vunpack.c.l.b16 %v275
  %v316 = vunpack.c.l.b16 %v276
  %v317 = vunpack.c.l.b16 %v277
  %v318 = vunpack.c.l.b16 %v278
  %v319 = vunpack.c.l.b16 %v279
  %v320 = vunpack.c.l.b16 %v280
  %v321 = vunpack.c.l.b16 %v281
  %v322 = vpack.c.b16 %v307, %v306
  %v323 = vpack.c.b16 %v309, %v308
  %v324 = vpack.c.b16 %v311, %v310
  %v325 = vpack.c.b16 %v313, %v312
  %v326 = vpack.c.b16 %v315, %v314
  %v327 = vpack.c.b16 %v317, %v316
  %v328 = vpack.c.b16 %v319, %v318
  %v329 = vpack.c.b16 %v321, %v320
  %338 = vmatprep.subr.bf16.mxu0 0
  %339 = vmatpush1.bf16.msra.mxu0 %v329
  %340 = vmatprep.subr.bf16.mxu0 0
  %341 = vmatpush1.bf16.msra.mxu0 %v328
  %342 = vmatprep.subr.bf16.mxu0 0
  %343 = vmatpush1.bf16.msra.mxu0 %v327
  %344 = vmatprep.subr.bf16.mxu0 0
  %345 = vmatpush1.bf16.msra.mxu0 %v326
  %346 = vmatprep.subr.bf16.mxu0 0
  %347 = vmatpush1.bf16.msra.mxu0 %v325
  %348 = vmatprep.subr.bf16.mxu0 0
  %349 = vmatpush1.bf16.msra.mxu0 %v324
  %350 = vmatprep.subr.bf16.mxu0 0
  %351 = vmatpush1.bf16.msra.mxu0 %v323
  %352 = vmatprep.subr.bf16.mxu0 0
  %353 = vmatpush1.bf16.msra.mxu0 %v322
  %354 = vmatprep.subr.bf16.mxu0 0
  %355 = vmatpush2.bf16.msra.mxu0 0
  %356 = vmatprep.subr.bf16.mxu0 0
  %357 = vmatpush2.bf16.msra.mxu0 0
  %358 = vmatprep.subr.bf16.mxu0 0
  %359 = vmatpush2.bf16.msra.mxu0 0
  %360 = vmatprep.subr.bf16.mxu0 0
  %361 = vmatpush2.bf16.msra.mxu0 0
  %362 = vmatprep.subr.bf16.mxu0 0
  %363 = vmatpush2.bf16.msra.mxu0 0
  %364 = vmatprep.subr.bf16.mxu0 0
  %365 = vmatpush2.bf16.msra.mxu0 0
  %366 = vmatprep.subr.bf16.mxu0 0
  %367 = vmatpush2.bf16.msra.mxu0 0
  %368 = vmatprep.subr.bf16.mxu0 0
  %369 = vmatpush2.bf16.msra.mxu0 0
  %370 = vmatprep.mubr.bf16.mxu0 0
  %371 = vmatmul.mubr.bf16.gmra.mxu0 %v283
  %v372 = vpop.f32.mrf.mxu0
  %v373 = vadd.f32 %v288, %v372
  %v374 = vpop.f32.mrf.mxu0
  %v375 = vpop.f32.mrf.mxu0
  %v376 = vpop.f32.mrf.mxu0
  %377 = vdwg.mxu0
  %v378 = vlaneseq
  %v379 = vand.u32 %v378, 127
  %v380 = vand.u32 %v379, 31
  %vm381 = vcmp.lt.s32.totalorder %v380, 4
  %v382 = vxor.u32 %v373, 2147483648
  %v383 = vmul.f32 %v382, 1.442695
  %v384 = vpow.pop %v383
  %v385 = vadd.f32 %v384, 1.0
  %v386 = vrcp.pop %v385
  %v387 = vmul.f32 1.0, %v386
  %v388 = vmul.f32 %v387, 4.0
  %v389 = vadd.f32 %v388, -5.0
  %v390 = vmul.f32 %v389, 1.442695
  %v391 = vpow.pop %v390
  %v392 = vadd.f32 %v373, %v27
  %v393 = vsel %vm381, %v392, %v391
  %394 = vst [vmem:[%s7] sm:$0xff] %v393
  // Predicated region
  $region30: #{model_forward.1} parent=0 // pred_check
    _
  $region31: #{model_forward.1} parent=0 // pred_check_branch
    %396 = sbr.rel (0) target = $region33
  $region32: #{model_forward.1} parent=0 // pred_region
    _
  $region33: #{model_forward.1} parent=0 // pred_fallthru
    _
  // Predicated region
  $region34: #{model_forward.1} parent=0 // pred_check
    _
  $region35: #{model_forward.1} parent=0 // pred_check_branch
    %398 = sbr.rel (0) target = $region37
  $region36: #{model_forward.1} parent=0 // pred_region
    _
  $region37: #{model_forward.1} parent=0 // pred_fallthru
    _

</llo_original>
